<compile_context>
chip_gen: v6e
topology: v6e:2x2x1
jax: 0.10.0
libtpu: 0.0.40
codegen_flags: <defaults>
</compile_context>

<pallas_src>
import numpy as np
import jax
import jax.numpy as jnp
from jax.experimental import pallas as pl
from jax.experimental.pallas import tpu as pltpu


def _mlp_kernel(x_ref, w1_ref, b1_ref, w2_ref, b2_ref, o_ref):
    # fc1 on the MXU, f32 accumulation regardless of operand dtype.
    h = jnp.dot(x_ref[...], w1_ref[...], preferred_element_type=jnp.float32)
    h = jax.nn.sigmoid(h + b1_ref[...])                      # f32 VPU/EUP
    # fc2: LHS cast to the wrapper-chosen matmul dtype (bf16 on the bf16 path,
    # f32 otherwise); accumulation stays f32.
    y = jnp.dot(h.astype(w2_ref.dtype), w2_ref[...],
                preferred_element_type=jnp.float32)
    o_ref[...] = jax.nn.sigmoid(y + b2_ref[...]).astype(o_ref.dtype)


def _round_up(a, m):
    return ((a + m - 1) // m) * m


def _cdiv(a, b):
    return -(-a // b)


def _select_tile(bp, row_read_bytes, row_vmem_bytes, *,
                 target_step_bytes, floor_step_bytes, vmem_buffer_budget):
    """Pick the batch tile (in packed rows)."""
    bp8 = _round_up(max(bp, 1), 8)
    cap = max((vmem_buffer_budget // row_vmem_bytes) // 8 * 8, 8)
    tm_target = _round_up(max(target_step_bytes // row_read_bytes, 1), 8)
    tm_target = max(min(tm_target, cap), 8)

    if bp8 <= tm_target:
        # Whole batch fits in one step.  Split into two steps (one per v7x
        # TensorCore) only if each half still clears the traffic floor --
        # otherwise a single step is cheaper on single-TC chips (v5e/v6e).
        half = _round_up(_cdiv(bp8, 2), 8)
        if half * row_read_bytes >= floor_step_bytes:
            return half
        return bp8

    # Multiple steps regardless: largest tile <= tm_target that gives an even
    # step count (both v7x cores get equal, large tiles), as long as it still
    # clears the traffic floor; otherwise fall back to the target tile.
    k = 1
    while True:
        tm_k = _round_up(_cdiv(bp8, 2 * k), 8)
        if tm_k <= tm_target:
            if tm_k * row_read_bytes >= floor_step_bytes:
                return tm_k
            return tm_target
        k += 1


def average_instance_nonlinear(x, w1, b1, w2, b2, *,
                               out_dtype=jnp.float32,
                               target_step_bytes=4 << 20,   # x read bytes / grid step
                               floor_step_bytes=1 << 20,    # min worthwhile step
                               vmem_buffer_budget=20 << 20):  # streamed buffers only
    """x: (B, input_d) [f32 or bf16]; w1: (hidden_d, input_d); b1: (hidden_d,);
       w2: (9, hidden_d); b2: (9,).  Returns (B, 9) in `out_dtype` (default f32)."""
    x = jnp.asarray(x)
    B, input_d = x.shape
    hidden_d = w1.shape[0]
    out_d = w2.shape[0]  # == 9

    # Matmul operand dtype: bf16 callers get bf16 weights (v5e MXU is bf16-only,
    # and it halves HBM reads); everything else stays f32.  Accumulation and
    # sigmoid math are always f32.
    if x.dtype not in (jnp.float32, jnp.bfloat16):
        x = x.astype(jnp.float32)
    mm_dtype = jnp.bfloat16 if x.dtype == jnp.bfloat16 else jnp.float32

    # ---- Lane packing: `pack` logical rows per 128-lane row ----------------
    pack = 1
    while 2 * pack * max(input_d, hidden_d) <= 128:
        pack *= 2
    pin, phid, pout = pack * input_d, pack * hidden_d, pack * out_d

    w1t = jnp.asarray(w1, jnp.float32).T                      # (input_d, hidden_d)
    w2t = jnp.asarray(w2, jnp.float32).T                      # (hidden_d, out_d)
    eye = jnp.eye(pack, dtype=jnp.float32)
    w1bd = jnp.kron(eye, w1t).astype(x.dtype)                 # (pin, phid) block-diag
    w2bd = jnp.kron(eye, w2t).astype(mm_dtype)                # (phid, pout) block-diag
    b1r = jnp.tile(jnp.asarray(b1, jnp.float32), pack)[None, :]   # (1, phid)
    b2r = jnp.tile(jnp.asarray(b2, jnp.float32), pack)[None, :]   # (1, pout)

    # Pad B to a multiple of `pack`, then fold `pack` rows into the lane dim.
    B_row_pad = _round_up(max(B, 1), pack)
    if B_row_pad != B:
        x = jnp.pad(x, ((0, B_row_pad - B), (0, 0)))
    bp = B_row_pad // pack
    xp = x.reshape(bp, pin)

    # ---- Tile selection (traffic-target driven, VMEM-capped) ---------------
    x_bytes = np.dtype(x.dtype).itemsize
    o_bytes = np.dtype(out_dtype).itemsize
    row_read_bytes = pin * x_bytes                               # HBM read / packed row
    row_vmem_bytes = (2 * _round_up(pin, 128) * x_bytes          # double-buffered,
                      + 2 * _round_up(pout, 128) * o_bytes)      # lane-padded VMEM / row
    tm = _select_tile(bp, row_read_bytes, row_vmem_bytes,
                      target_step_bytes=target_step_bytes,
                      floor_step_bytes=floor_step_bytes,
                      vmem_buffer_budget=vmem_buffer_budget)

    bp_pad = _round_up(bp, tm)
    if bp_pad != bp:
        xp = jnp.pad(xp, ((0, bp_pad - bp), (0, 0)))

    grid = (bp_pad // tm,)

    out = pl.pallas_call(
        _mlp_kernel,
        out_shape=jax.ShapeDtypeStruct((bp_pad, pout), out_dtype),
        grid_spec=pltpu.PrefetchScalarGridSpec(
            num_scalar_prefetch=0,
            grid=grid,
            in_specs=[
                pl.BlockSpec((tm, pin), lambda i: (i, 0)),     # packed x tile
                pl.BlockSpec((pin, phid), lambda i: (0, 0)),   # block-diag W1^T (resident)
                pl.BlockSpec((1, phid), lambda i: (0, 0)),     # tiled b1
                pl.BlockSpec((phid, pout), lambda i: (0, 0)),  # block-diag W2^T (resident)
                pl.BlockSpec((1, pout), lambda i: (0, 0)),     # tiled b2
            ],
            out_specs=pl.BlockSpec((tm, pout), lambda i: (i, 0)),
        ),
        compiler_params=pltpu.CompilerParams(
            dimension_semantics=("parallel",),
            vmem_limit_bytes=32 * 1024 * 1024,
        ),
    )(xp, w1bd, b1r, w2bd, b2r)

    # Unpack lanes back into rows and drop batch padding.
    out = out.reshape(bp_pad * pack, out_d)
    return out[:B]


def _reference(x, w1, b1, w2, b2):
    h = jax.nn.sigmoid(x.astype(jnp.float32) @ w1.T + b1)
    return jax.nn.sigmoid(h @ w2.T + b2)


if __name__ == "__main__":
    # Small shapes consistent with the module: batch=8, input_d=32, hidden_d=32, out=9.
    B, input_d, hidden_d, out_d = 8, 32, 32, 9

    key = jax.random.PRNGKey(0)
    kx, k1, k2, k3, k4 = jax.random.split(key, 5)

    x = jax.random.normal(kx, (B, input_d), jnp.float32)

    # Deterministic parameter init (PyTorch Linear default: U(-1/sqrt(fan_in), 1/sqrt(fan_in))).
    bound1 = 1.0 / jnp.sqrt(input_d)
    w1 = jax.random.uniform(k1, (hidden_d, input_d), jnp.float32, -bound1, bound1)
    b1 = jax.random.uniform(k2, (hidden_d,), jnp.float32, -bound1, bound1)
    bound2 = 1.0 / jnp.sqrt(hidden_d)
    w2 = jax.random.uniform(k3, (out_d, hidden_d), jnp.float32, -bound2, bound2)
    b2 = jax.random.uniform(k4, (out_d,), jnp.float32, -bound2, bound2)

    # f32 path: must match the reference tightly.
    out = jax.block_until_ready(average_instance_nonlinear(x, w1, b1, w2, b2))
    ref = _reference(x, w1, b1, w2, b2)
    assert out.shape == (B, out_d)
    assert jnp.allclose(out, ref, atol=1e-5, rtol=1e-5), "f32 mismatch vs reference"

    # Exercise the padded / non-multiple batch path and the bf16 input path
    # (bf16 weights in-kernel -> looser tolerance, documented above).
    B2 = 13
    x2 = jax.random.normal(jax.random.PRNGKey(1), (B2, input_d), jnp.float32)
    out2 = jax.block_until_ready(
        average_instance_nonlinear(x2.astype(jnp.bfloat16), w1, b1, w2, b2))
    ref2 = _reference(x2.astype(jnp.bfloat16), w1, b1, w2, b2)
    assert out2.shape == (B2, out_d)
    assert jnp.allclose(out2, ref2, atol=2e-2, rtol=2e-2), "bf16 mismatch vs reference"

    print("KERNEL_OK")
</pallas_src>

<mosaic_0001>
module attributes {stable_mosaic.version = 11 : i64} {
  func.func @_mlp_kernel(%arg0: i32, %arg1: memref<8x128xf32, #tpu.memory_space<vmem>>, %arg2: memref<128x128xf32, #tpu.memory_space<vmem>>, %arg3: memref<1x128xf32, #tpu.memory_space<vmem>>, %arg4: memref<128x36xf32, #tpu.memory_space<vmem>>, %arg5: memref<1x36xf32, #tpu.memory_space<vmem>>, %arg6: memref<8x36xf32, #tpu.memory_space<vmem>>) attributes {dimension_semantics = [#tpu.dimension_semantics<parallel>], iteration_bounds = array<i64: 1>, scalar_prefetch = 0 : i64, scratch_operands = 0 : i64, tpu.core_type = #tpu.core_type<tc>, window_params = [{transform_indices = @transform_0, window_bounds = array<i64: 8, 128>}, {pipeline_mode = #tpu.pipeline_mode<synchronous>, transform_indices = @transform_1, window_bounds = array<i64: 128, 128>}, {pipeline_mode = #tpu.pipeline_mode<synchronous>, transform_indices = @transform_2, window_bounds = array<i64: 1, 128>}, {pipeline_mode = #tpu.pipeline_mode<synchronous>, transform_indices = @transform_3, window_bounds = array<i64: 128, 36>}, {pipeline_mode = #tpu.pipeline_mode<synchronous>, transform_indices = @transform_4, window_bounds = array<i64: 1, 36>}, {transform_indices = @transform_5, window_bounds = array<i64: 8, 36>}]} {
    %c0 = arith.constant 0 : index
    %c0_0 = arith.constant 0 : index
    %0 = vector.load %arg1[%c0, %c0_0] : memref<8x128xf32, #tpu.memory_space<vmem>>, vector<8x128xf32>
    %c0_1 = arith.constant 0 : index
    %c0_2 = arith.constant 0 : index
    %1 = vector.load %arg2[%c0_1, %c0_2] : memref<128x128xf32, #tpu.memory_space<vmem>>, vector<128x128xf32>
    %cst = arith.constant dense<0.000000e+00> : vector<8x128xf32>
    %2 = tpu.matmul %0, %1, %cst {dimension_numbers = #tpu.dot_dimension_numbers<[1], [0], [0], [1], [0, 0, 1, 1], [], []>} : vector<8x128xf32>, vector<128x128xf32>, vector<8x128xf32> -> vector<8x128xf32>
    %c0_3 = arith.constant 0 : index
    %c0_4 = arith.constant 0 : index
    %3 = vector.load %arg3[%c0_3, %c0_4] : memref<1x128xf32, #tpu.memory_space<vmem>>, vector<1x128xf32>
    %4 = vector.broadcast %3 : vector<1x128xf32> to vector<8x128xf32>
    %5 = arith.addf %2, %4 : vector<8x128xf32>
    %6 = arith.negf %5 : vector<8x128xf32>
    %7 = math.exp %6 : vector<8x128xf32>
    %cst_5 = arith.constant 1.000000e+00 : f32
    %8 = vector.broadcast %cst_5 : f32 to vector<8x128xf32>
    %9 = arith.addf %8, %7 : vector<8x128xf32>
    %10 = arith.divf %8, %9 : vector<8x128xf32>
    %c0_6 = arith.constant 0 : index
    %c0_7 = arith.constant 0 : index
    %11 = vector.load %arg4[%c0_6, %c0_7] : memref<128x36xf32, #tpu.memory_space<vmem>>, vector<128x36xf32>
    %cst_8 = arith.constant dense<0.000000e+00> : vector<8x36xf32>
    %12 = tpu.matmul %10, %11, %cst_8 {dimension_numbers = #tpu.dot_dimension_numbers<[1], [0], [0], [1], [0, 0, 1, 1], [], []>} : vector<8x128xf32>, vector<128x36xf32>, vector<8x36xf32> -> vector<8x36xf32>
    %c0_9 = arith.constant 0 : index
    %c0_10 = arith.constant 0 : index
    %13 = vector.load %arg5[%c0_9, %c0_10] : memref<1x36xf32, #tpu.memory_space<vmem>>, vector<1x36xf32>
    %14 = vector.broadcast %13 : vector<1x36xf32> to vector<8x36xf32>
    %15 = arith.addf %12, %14 : vector<8x36xf32>
    %16 = arith.negf %15 : vector<8x36xf32>
    %17 = math.exp %16 : vector<8x36xf32>
    %cst_11 = arith.constant 1.000000e+00 : f32
    %18 = vector.broadcast %cst_11 : f32 to vector<8x36xf32>
    %19 = arith.addf %18, %17 : vector<8x36xf32>
    %20 = arith.divf %18, %19 : vector<8x36xf32>
    %c0_12 = arith.constant 0 : index
    %c0_13 = arith.constant 0 : index
    %21 = vector.load %arg6[%c0_12, %c0_13] : memref<8x36xf32, #tpu.memory_space<vmem>>, vector<8x36xf32>
    tpu.vector_store %arg6[%c0_12, %c0_13], %20 {strides = array<i32>} : memref<8x36xf32, #tpu.memory_space<vmem>>, vector<8x36xf32>,
    return
  }
  func.func @transform_0(%arg0: i32) -> (i32, i32) {
    %c0_i32 = arith.constant 0 : i32
    %c0_i32_0 = arith.constant 0 : i32
    return %arg0, %c0_i32 : i32, i32
  }
  func.func @transform_1(%arg0: i32) -> (i32, i32) {
    %c0_i32 = arith.constant 0 : i32
    %c0_i32_0 = arith.constant 0 : i32
    %c0_i32_1 = arith.constant 0 : i32
    return %c0_i32, %c0_i32_0 : i32, i32
  }
  func.func @transform_2(%arg0: i32) -> (i32, i32) {
    %c0_i32 = arith.constant 0 : i32
    %c0_i32_0 = arith.constant 0 : i32
    %c0_i32_1 = arith.constant 0 : i32
    return %c0_i32, %c0_i32_0 : i32, i32
  }
  func.func @transform_3(%arg0: i32) -> (i32, i32) {
    %c0_i32 = arith.constant 0 : i32
    %c0_i32_0 = arith.constant 0 : i32
    %c0_i32_1 = arith.constant 0 : i32
    return %c0_i32, %c0_i32_0 : i32, i32
  }
  func.func @transform_4(%arg0: i32) -> (i32, i32) {
    %c0_i32 = arith.constant 0 : i32
    %c0_i32_0 = arith.constant 0 : i32
    %c0_i32_1 = arith.constant 0 : i32
    return %c0_i32, %c0_i32_0 : i32, i32
  }
  func.func @transform_5(%arg0: i32) -> (i32, i32) {
    %c0_i32 = arith.constant 0 : i32
    %c0_i32_0 = arith.constant 0 : i32
    return %arg0, %c0_i32 : i32, i32
  }
}

</mosaic_0001>

<llo_original>
// kernel: tpu_custom_call.1
$region0: #{tpu_custom_call.1}
  #allocation0 [shape = 'u32[]', space=smem, size = 0x4, offset = 0x4, fixed_abs, tag = 'smem constant byte address 0x4 - core index']
  #allocation1 [shape = 'u32[144,128]{1,0:T(1,128)}', space=vmem, size = 0x12000, scoped, tag = 'internal scratch']
  %s0 = inlined_call_operand.vmem [shape: f32[8,128], index: 0, kind: input, shape index: {}]
  %s1 = inlined_call_operand.vmem [shape: f32[128,128], index: 1, kind: input, shape index: {}]
  %s2 = inlined_call_operand.vmem [shape: f32[1,128], index: 2, kind: input, shape index: {}]
  %s3 = inlined_call_operand.vmem [shape: f32[128,36], index: 3, kind: input, shape index: {}]
  %s4 = inlined_call_operand.vmem [shape: f32[1,36], index: 4, kind: input, shape index: {}]
  %s5 = inlined_call_operand.hbm [shape: f32[8,36], index: 5, kind: output, shape index: {}]
  %s6 = sld [smem:[#allocation0]]
  $region30: #{tpu_custom_call.1} parent=0
    _
  %s8 = ssub.s32 1, %s6
  %s9 = scalar_select 0, %s8, %s6
  $region1: #{tpu_custom_call.1} parent=0
    #allocation2 [shape = 'u8[4096]{0}', space=vmem, size = 0x1000, scoped, tag = 'output window, operand 0, single buffered']
    #allocation3 [shape = 's32[1]{0}', space=sflag, size = 0x4, scoped, tag = 'scoped memory for tpu_custom_call.1']
    %10 = vsyncpa [#allocation3], 0
    // Predicated region
    $region2: #{tpu_custom_call.1} parent=1 // pred_check
      _
    $region3: #{tpu_custom_call.1} parent=1 // pred_check_branch
      %12 = sbr.rel (0) target = $region5
    $region4: #{tpu_custom_call.1} parent=1 // pred_region
      _
    $region5: #{tpu_custom_call.1} parent=1 // pred_fallthru
      _
    // Predicated region
    $region6: #{tpu_custom_call.1} parent=1 // pred_check
      _
    $region7: #{tpu_custom_call.1} parent=1 // pred_check_branch
      %14 = sbr.rel (0) target = $region9
    $region8: #{tpu_custom_call.1} parent=1 // pred_region
      _
    $region9: #{tpu_custom_call.1} parent=1 // pred_fallthru
      _
    // Predicated region
    $region10: #{tpu_custom_call.1} parent=1 // pred_check
      _
    $region11: #{tpu_custom_call.1} parent=1 // pred_check_branch
      %16 = sbr.rel (0) target = $region13
    $region12: #{tpu_custom_call.1} parent=1 // pred_region
      _
    $region13: #{tpu_custom_call.1} parent=1 // pred_fallthru
      _
    // Predicated region
    $region14: #{tpu_custom_call.1} parent=1 // pred_check
      _
    $region15: #{tpu_custom_call.1} parent=1 // pred_check_branch
      %18 = sbr.rel (0) target = $region17
    $region16: #{tpu_custom_call.1} parent=1 // pred_region
      _
    $region17: #{tpu_custom_call.1} parent=1 // pred_fallthru
      _
    // Predicated region
    $region18: #{tpu_custom_call.1} parent=1 // pred_check
      _
    $region19: #{tpu_custom_call.1} parent=1 // pred_check_branch
      %20 = sbr.rel (0) target = $region21
    $region20: #{tpu_custom_call.1} parent=1 // pred_region
      _
    $region21: #{tpu_custom_call.1} parent=1 // pred_fallthru
      _
    %v21 = vld [vmem:[%s0] sm:$0xff]
    %v22 = vld [vmem:[%s1] sm:$0xff]
    %v23 = vld [vmem:[%s1 + $0x8] sm:$0xff]
    %v24 = vld [vmem:[%s1 + $0x10] sm:$0xff]
    %v25 = vld [vmem:[%s1 + $0x18] sm:$0xff]
    %v26 = vld [vmem:[%s1 + $0x20] sm:$0xff]
    %v27 = vld [vmem:[%s1 + $0x28] sm:$0xff]
    %v28 = vld [vmem:[%s1 + $0x30] sm:$0xff]
    %v29 = vld [vmem:[%s1 + $0x38] sm:$0xff]
    %v30 = vld [vmem:[%s1 + $0x40] sm:$0xff]
    %v31 = vld [vmem:[%s1 + $0x48] sm:$0xff]
    %v32 = vld [vmem:[%s1 + $0x50] sm:$0xff]
    %v33 = vld [vmem:[%s1 + $0x58] sm:$0xff]
    %v34 = vld [vmem:[%s1 + $0x60] sm:$0xff]
    %v35 = vld [vmem:[%s1 + $0x68] sm:$0xff]
    %v36 = vld [vmem:[%s1 + $0x70] sm:$0xff]
    %v37 = vld [vmem:[%s1 + $0x78] sm:$0xff]
    %v38 = vld [vmem:[%s2] sm:$0x1]
    %v40 = vlaneseq
    %v41 = vshrl.u32 %v40, 7
    %v42 = vsub.s32 0, %v41
    %v43 = vrot.slane %v38, %v42
    %45 = vmatprep.subr.mxu0 0.0
    %46 = vmatpush1.msra.mxu0 %v37
    %47 = vmatprep.subr.mxu0 0.0
    %48 = vmatpush1.msra.mxu0 %v36
    %49 = vmatprep.subr.mxu0 0.0
    %50 = vmatpush1.msra.mxu0 %v35
    %51 = vmatprep.subr.mxu0 0.0
    %52 = vmatpush1.msra.mxu0 %v34
    %53 = vmatprep.subr.mxu0 0.0
    %54 = vmatpush1.msra.mxu0 %v33
    %55 = vmatprep.subr.mxu0 0.0
    %56 = vmatpush1.msra.mxu0 %v32
    %57 = vmatprep.subr.mxu0 0.0
    %58 = vmatpush1.msra.mxu0 %v31
    %59 = vmatprep.subr.mxu0 0.0
    %60 = vmatpush1.msra.mxu0 %v30
    %61 = vmatprep.subr.mxu0 0.0
    %62 = vmatpush1.msra.mxu0 %v29
    %63 = vmatprep.subr.mxu0 0.0
    %64 = vmatpush1.msra.mxu0 %v28
    %65 = vmatprep.subr.mxu0 0.0
    %66 = vmatpush1.msra.mxu0 %v27
    %67 = vmatprep.subr.mxu0 0.0
    %68 = vmatpush1.msra.mxu0 %v26
    %69 = vmatprep.subr.mxu0 0.0
    %70 = vmatpush1.msra.mxu0 %v25
    %71 = vmatprep.subr.mxu0 0.0
    %72 = vmatpush1.msra.mxu0 %v24
    %73 = vmatprep.subr.mxu0 0.0
    %74 = vmatpush1.msra.mxu0 %v23
    %75 = vmatprep.subr.mxu0 0.0
    %76 = vmatpush1.msra.mxu0 %v22
    %77 = vmatprep.subr.mxu0 0.0
    %78 = vmatpush2.msra.mxu0 0.0
    %79 = vmatprep.subr.mxu0 0.0
    %80 = vmatpush2.msra.mxu0 0.0
    %81 = vmatprep.subr.mxu0 0.0
    %82 = vmatpush2.msra.mxu0 0.0
    %83 = vmatprep.subr.mxu0 0.0
    %84 = vmatpush2.msra.mxu0 0.0
    %85 = vmatprep.subr.mxu0 0.0
    %86 = vmatpush2.msra.mxu0 0.0
    %87 = vmatprep.subr.mxu0 0.0
    %88 = vmatpush2.msra.mxu0 0.0
    %89 = vmatprep.subr.mxu0 0.0
    %90 = vmatpush2.msra.mxu0 0.0
    %91 = vmatprep.subr.mxu0 0.0
    %92 = vmatpush2.msra.mxu0 0.0
    %93 = vmatprep.subr.mxu0 0.0
    %94 = vmatpush2.msra.mxu0 0.0
    %95 = vmatprep.subr.mxu0 0.0
    %96 = vmatpush2.msra.mxu0 0.0
    %97 = vmatprep.subr.mxu0 0.0
    %98 = vmatpush2.msra.mxu0 0.0
    %99 = vmatprep.subr.mxu0 0.0
    %100 = vmatpush2.msra.mxu0 0.0
    %101 = vmatprep.subr.mxu0 0.0
    %102 = vmatpush2.msra.mxu0 0.0
    %103 = vmatprep.subr.mxu0 0.0
    %104 = vmatpush2.msra.mxu0 0.0
    %105 = vmatprep.subr.mxu0 0.0
    %106 = vmatpush2.msra.mxu0 0.0
    %107 = vmatprep.subr.mxu0 0.0
    %108 = vmatpush2.msra.mxu0 0.0
    %109 = vmatprep.mubr.f32.mxu0 0.0
    %110 = vmatmul.mubr.f32.gmra.mxu0 %v21
    %v111 = vpop.f32.mrf.mxu0
    %v112 = vadd.f32 %v43, %v111
    %v113 = vpop.f32.mrf.mxu0
    %114 = vdwg.mxu0
    %v115 = vxor.u32 %v112, 2147483648
    %v116 = vmul.f32 %v115, 1.442695
    %v117 = vpow.pop %v116
    %v118 = vadd.f32 %v117, 1.0
    %v119 = vrcp.pop %v118
    %v120 = vmul.f32 1.0, %v119
    %v121 = vld [vmem:[%s3] sm:$0xff]
    %v122 = vld [vmem:[%s3 + $0x8] sm:$0xff]
    %v123 = vld [vmem:[%s3 + $0x10] sm:$0xff]
    %v124 = vld [vmem:[%s3 + $0x18] sm:$0xff]
    %v125 = vld [vmem:[%s3 + $0x20] sm:$0xff]
    %v126 = vld [vmem:[%s3 + $0x28] sm:$0xff]
    %v127 = vld [vmem:[%s3 + $0x30] sm:$0xff]
    %v128 = vld [vmem:[%s3 + $0x38] sm:$0xff]
    %v129 = vld [vmem:[%s3 + $0x40] sm:$0xff]
    %v130 = vld [vmem:[%s3 + $0x48] sm:$0xff]
    %v131 = vld [vmem:[%s3 + $0x50] sm:$0xff]
    %v132 = vld [vmem:[%s3 + $0x58] sm:$0xff]
    %v133 = vld [vmem:[%s3 + $0x60] sm:$0xff]
    %v134 = vld [vmem:[%s3 + $0x68] sm:$0xff]
    %v135 = vld [vmem:[%s3 + $0x70] sm:$0xff]
    %v136 = vld [vmem:[%s3 + $0x78] sm:$0xff]
    %v137 = vld [vmem:[%s4] sm:$0x1]
    %v139 = vlaneseq
    %v140 = vshrl.u32 %v139, 7
    %v141 = vsub.s32 0, %v140
    %v142 = vrot.slane %v137, %v141
    %144 = vmatprep.subr.mxu0 0.0
    %145 = vmatpush1.msra.mxu0 %v136
    %146 = vmatprep.subr.mxu0 0.0
    %147 = vmatpush1.msra.mxu0 %v135
    %148 = vmatprep.subr.mxu0 0.0
    %149 = vmatpush1.msra.mxu0 %v134
    %150 = vmatprep.subr.mxu0 0.0
    %151 = vmatpush1.msra.mxu0 %v133
    %152 = vmatprep.subr.mxu0 0.0
    %153 = vmatpush1.msra.mxu0 %v132
    %154 = vmatprep.subr.mxu0 0.0
    %155 = vmatpush1.msra.mxu0 %v131
    %156 = vmatprep.subr.mxu0 0.0
    %157 = vmatpush1.msra.mxu0 %v130
    %158 = vmatprep.subr.mxu0 0.0
    %159 = vmatpush1.msra.mxu0 %v129
    %160 = vmatprep.subr.mxu0 0.0
    %161 = vmatpush1.msra.mxu0 %v128
    %162 = vmatprep.subr.mxu0 0.0
    %163 = vmatpush1.msra.mxu0 %v127
    %164 = vmatprep.subr.mxu0 0.0
    %165 = vmatpush1.msra.mxu0 %v126
    %166 = vmatprep.subr.mxu0 0.0
    %167 = vmatpush1.msra.mxu0 %v125
    %168 = vmatprep.subr.mxu0 0.0
    %169 = vmatpush1.msra.mxu0 %v124
    %170 = vmatprep.subr.mxu0 0.0
    %171 = vmatpush1.msra.mxu0 %v123
    %172 = vmatprep.subr.mxu0 0.0
    %173 = vmatpush1.msra.mxu0 %v122
    %174 = vmatprep.subr.mxu0 0.0
    %175 = vmatpush1.msra.mxu0 %v121
    %176 = vmatprep.subr.mxu0 0.0
    %177 = vmatpush2.msra.mxu0 0.0
    %178 = vmatprep.subr.mxu0 0.0
    %179 = vmatpush2.msra.mxu0 0.0
    %180 = vmatprep.subr.mxu0 0.0
    %181 = vmatpush2.msra.mxu0 0.0
    %182 = vmatprep.subr.mxu0 0.0
    %183 = vmatpush2.msra.mxu0 0.0
    %184 = vmatprep.subr.mxu0 0.0
    %185 = vmatpush2.msra.mxu0 0.0
    %186 = vmatprep.subr.mxu0 0.0
    %187 = vmatpush2.msra.mxu0 0.0
    %188 = vmatprep.subr.mxu0 0.0
    %189 = vmatpush2.msra.mxu0 0.0
    %190 = vmatprep.subr.mxu0 0.0
    %191 = vmatpush2.msra.mxu0 0.0
    %192 = vmatprep.subr.mxu0 0.0
    %193 = vmatpush2.msra.mxu0 0.0
    %194 = vmatprep.subr.mxu0 0.0
    %195 = vmatpush2.msra.mxu0 0.0
    %196 = vmatprep.subr.mxu0 0.0
    %197 = vmatpush2.msra.mxu0 0.0
    %198 = vmatprep.subr.mxu0 0.0
    %199 = vmatpush2.msra.mxu0 0.0
    %200 = vmatprep.subr.mxu0 0.0
    %201 = vmatpush2.msra.mxu0 0.0
    %202 = vmatprep.subr.mxu0 0.0
    %203 = vmatpush2.msra.mxu0 0.0
    %204 = vmatprep.subr.mxu0 0.0
    %205 = vmatpush2.msra.mxu0 0.0
    %206 = vmatprep.subr.mxu0 0.0
    %207 = vmatpush2.msra.mxu0 0.0
    %208 = vmatprep.mubr.f32.mxu0 0.0
    %209 = vmatmul.mubr.f32.gmra.mxu0 %v120
    %v210 = vpop.f32.mrf.mxu0
    %v211 = vadd.f32 %v142, %v210
    %v212 = vpop.f32.mrf.mxu0
    %213 = vdwg.mxu0
    %v214 = vxor.u32 %v211, 2147483648
    %v215 = vmul.f32 %v214, 1.442695
    %v216 = vpow.pop %v215
    %v217 = vadd.f32 %v216, 1.0
    %v218 = vrcp.pop %v217
    %v219 = vmul.f32 1.0, %v218
    %vm220 = vcmask 293888
    %221 = vst.msk [vmem:[#allocation2] sm:$0xff] %vm220, %v219
    // Predicated region
    $region22: #{tpu_custom_call.1} parent=1 // pred_check
      _
    $region23: #{tpu_custom_call.1} parent=1 // pred_check_branch
      %223 = sbr.rel (0) target = $region25
    $region24: #{tpu_custom_call.1} parent=1 // pred_region
      %s225 = ssub.s32 128, 128
      %226 = vsyncadd [#allocation3], %s225
      %s228 = sshll.u32 [#allocation2], 4
      %s229 = int_to_ptr.vmem [resolvable:$true] %s228
      %231 = dma.vmem_to_hbm [thread:$0]  %s229, 128, %s5, [#allocation3]
    $region25: #{tpu_custom_call.1} parent=1 // pred_fallthru
      _
    // Predicated region
    $region26: #{tpu_custom_call.1} parent=1 // pred_check
      _
    $region27: #{tpu_custom_call.1} parent=1 // pred_check_branch
      %233 = sbr.rel (0) target = $region29
    $region28: #{tpu_custom_call.1} parent=1 // pred_region
      %234 = dma.done [#allocation3], 128
    $region29: #{tpu_custom_call.1} parent=1 // pred_fallthru
      _
    %235 = vsyncpa [#allocation3], 1

</llo_original>
